<compile_context>
chip_gen: v5e
topology: v5e:2x2
jax: 0.10.0
libtpu: 0.0.40
codegen_flags: <defaults>
</compile_context>

<pallas_src>
import functools

import jax
import jax.numpy as jnp
from jax import lax
from jax.experimental import pallas as pl
from jax.experimental.pallas import tpu as pltpu


def _additive_attn_kernel(Bt, Kt, n_kt, cdt,
                          vl_ref,                      # scalar-prefetch (B,) int32 in SMEM
                          q_ref, k_ref, v_ref,         # (Bt,Q,Dq) (Bt,Kp,Dk) (Bt,Kp,Dvp)
                          wqt_ref, wkt_ref, wv_ref,    # (Dq,H) (Dk,H) (1,H)  (pre-transposed)
                          o_ref,                       # (Bt,Q,Dvp)
                          kp_sc, m_sc, l_sc, acc_sc):  # VMEM scratch
    _, Q, Dq = q_ref.shape
    _, Kp, _ = k_ref.shape
    H = wqt_ref.shape[1]
    Dvp = v_ref.shape[2]

    gb = pl.program_id(0)

    # ---- Projections: one big MXU matmul per weight for all Bt batches ----
    q2 = q_ref[...].reshape(Bt * Q, Dq).astype(cdt)
    k2 = k_ref[...].reshape(Bt * Kp, Dq if Dq == k_ref.shape[2] else k_ref.shape[2])
    k2 = k_ref[...].reshape(Bt * Kp, k_ref.shape[2]).astype(cdt)
    qp_all = jnp.dot(q2, wqt_ref[...].astype(cdt),
                     preferred_element_type=jnp.float32)            # (Bt*Q, H) f32
    kp_all = jnp.dot(k2, wkt_ref[...].astype(cdt),
                     preferred_element_type=jnp.float32)            # (Bt*Kp, H) f32
    qp_all = qp_all.reshape(Bt, Q, H).astype(cdt)                   # value, stays live
    kp_sc[...] = kp_all.reshape(Bt, Kp, H).astype(cdt)              # resident in VMEM scratch

    wv_b = wv_ref[...].astype(jnp.float32).reshape(1, 1, H)         # (1,1,H)

    for bb in range(Bt):                       # small static unroll (Bt <= 8)
        vlen = vl_ref[gb * Bt + bb]
        qp_b = qp_all[bb]                      # (Q, H)

        m_sc[...] = jnp.full((Q, 1), -1e30, dtype=jnp.float32)
        l_sc[...] = jnp.zeros((Q, 1), dtype=jnp.float32)
        acc_sc[...] = jnp.zeros((Q, Dvp), dtype=jnp.float32)

        # ---- online softmax over key tiles; live intermediate is (Q, Kt, H) ----
        @pl.loop(0, n_kt)
        def _(t):
            start = pl.multiple_of(t * Kt, Kt)

            @pl.when(start < vlen)             # skip fully-masked key tiles
            def _():
                kp_t = kp_sc[bb, pl.ds(start, Kt), :]                    # (Kt, H) cdt
                feats = jnp.tanh(qp_b[:, None, :] + kp_t[None, :, :])    # (Q, Kt, H) cdt
                # w_v contraction; accumulate in f32 (tile-bounded temporaries only).
                s = jnp.sum(feats.astype(jnp.float32) * wv_b, axis=-1)   # (Q, Kt) f32
                col = start + lax.broadcasted_iota(jnp.int32, s.shape, 1)
                s = jnp.where(col < vlen, s, jnp.float32(-1e6))

                m_prev = m_sc[...]
                m_new = jnp.maximum(m_prev, jnp.max(s, axis=-1, keepdims=True))
                alpha = jnp.exp(m_prev - m_new)
                p = jnp.exp(s - m_new)                                   # (Q, Kt) f32
                l_sc[...] = alpha * l_sc[...] + jnp.sum(p, axis=-1, keepdims=True)
                v_t = v_ref[bb, pl.ds(start, Kt), :].astype(cdt)         # (Kt, Dvp)
                acc_sc[...] = alpha * acc_sc[...] + jnp.dot(
                    p.astype(cdt), v_t, preferred_element_type=jnp.float32)
                m_sc[...] = m_new

        inv_l = pl.reciprocal(l_sc[...], approx=False)   # exact: EUP is tanh-bound
        o_ref[bb] = (acc_sc[...] * inv_l).astype(o_ref.dtype)


def _default_use_bf16():
    """bf16 tanh/exp/matmul path only on chips whose VPU/EUP support bf16 (v6e/v7x)."""
    try:
        kind = jax.devices()[0].device_kind.lower()
    except Exception:
        return False
    return ("v6" in kind) or ("v7" in kind)


def _round_up(x, m):
    return ((x + m - 1) // m) * m


def _choose_kt(K, Q, H, feat_bytes):
    """Largest key tile Kt (multiple of 8) such that the (Q, Kt, H) tanh tile plus
    its f32 reduction temp fit a VMEM budget sized for v7x (64 MiB physical VMEM)."""
    budget = 16 * 1024 * 1024
    per_k = max(Q * H * (feat_bytes + 8), 1)     # cdt feats + f32 product/slack
    kt = budget // per_k
    if kt >= K:
        return K
    return max(8, (kt // 8) * 8)


def _choose_bt(B, Q, K_pad, Dq, Dk, Dvp, H, feat_bytes):
    """Pack Bt batches per grid step so the projection matmuls see >=~256 rows,
    subject to a per-step VMEM block budget and B % Bt == 0."""
    if Q % 8 != 0 or K_pad % 8 != 0:
        return 1
    cap = max(1, min(8, 256 // max(Q, 1)))
    budget = 24 * 1024 * 1024
    best = 1
    for cand in range(1, cap + 1):
        if B % cand != 0:
            continue
        blk = cand * (Q * Dq + K_pad * Dk + K_pad * Dvp + Q * Dvp) * 4 * 2  # dbl-buffered blocks
        scr = cand * K_pad * H * feat_bytes                                 # k_proj scratch
        if blk + scr <= budget:
            best = cand
    return best


def additive_attention(queries, keys, values, valid_lens, W_q, W_k, w_v,
                       *, use_bf16=None):
    """queries (B,Q,Dq), keys (B,K,Dk), values (B,K,Dv), valid_lens (B,) int."""
    B, Q, Dq = queries.shape
    _, K, Dk = keys.shape
    _, _, Dv = values.shape
    H = W_q.shape[0]

    if use_bf16 is None:
        use_bf16 = _default_use_bf16()
    cdt = jnp.bfloat16 if use_bf16 else jnp.float32
    feat_bytes = 2 if use_bf16 else 4

    # Key-axis tile for the in-kernel online-softmax loop; pad K to a multiple.
    Kt = _choose_kt(K, Q, H, feat_bytes)
    K_pad = _round_up(K, Kt)
    n_kt = K_pad // Kt
    # Lane-dense output: pad value dim to a multiple of 128 (sliced off below).
    Dvp = _round_up(Dv, 128)

    if K_pad != K:
        keys = jnp.pad(keys, ((0, 0), (0, K_pad - K), (0, 0)))
        values = jnp.pad(values, ((0, 0), (0, K_pad - K), (0, 0)))
    if Dvp != Dv:
        values = jnp.pad(values, ((0, 0), (0, 0), (0, Dvp - Dv)))

    Bt = _choose_bt(B, Q, K_pad, Dq, Dk, Dvp, H, feat_bytes)

    # One-time weight transposes in the wrapper (keeps the XLU out of the kernel).
    WqT = jnp.transpose(W_q)             # (Dq, H)
    WkT = jnp.transpose(W_k)             # (Dk, H)
    valid_lens = valid_lens.astype(jnp.int32)

    kernel = functools.partial(_additive_attn_kernel, Bt, Kt, n_kt, cdt)

    grid_spec = pltpu.PrefetchScalarGridSpec(
        num_scalar_prefetch=1,
        grid=(B // Bt,),
        in_specs=[
            pl.BlockSpec((Bt, Q, Dq),      lambda b, vl: (b, 0, 0)),
            pl.BlockSpec((Bt, K_pad, Dk),  lambda b, vl: (b, 0, 0)),
            pl.BlockSpec((Bt, K_pad, Dvp), lambda b, vl: (b, 0, 0)),
            pl.BlockSpec((Dq, H), lambda b, vl: (0, 0)),
            pl.BlockSpec((Dk, H), lambda b, vl: (0, 0)),
            pl.BlockSpec((1, H),  lambda b, vl: (0, 0)),
        ],
        out_specs=pl.BlockSpec((Bt, Q, Dvp), lambda b, vl: (b, 0, 0)),
        scratch_shapes=[
            pltpu.VMEM((Bt, K_pad, H), cdt),     # k_proj, resident per grid step
            pltpu.VMEM((Q, 1), jnp.float32),     # online-softmax running max
            pltpu.VMEM((Q, 1), jnp.float32),     # online-softmax running sum
            pltpu.VMEM((Q, Dvp), jnp.float32),   # output accumulator
        ],
    )

    out = pl.pallas_call(
        kernel,
        out_shape=jax.ShapeDtypeStruct((B, Q, Dvp), jnp.float32),
        grid_spec=grid_spec,
        compiler_params=pltpu.CompilerParams(
            dimension_semantics=("parallel",),      # batch groups are independent
            vmem_limit_bytes=48 * 1024 * 1024,      # sized to stay inside v7x's 64 MiB VMEM
        ),
    )(valid_lens, queries, keys, values, WqT, WkT, w_v)

    if Dvp != Dv:
        out = out[..., :Dv]
    return out


def additive_attention_ref(queries, keys, values, valid_lens, W_q, W_k, w_v):
    """Pure-JAX reference matching the PyTorch forward."""
    q_proj = jnp.einsum('bqd,hd->bqh', queries, W_q)
    k_proj = jnp.einsum('bkd,hd->bkh', keys, W_k)
    feats = jnp.tanh(q_proj[:, :, None, :] + k_proj[:, None, :, :])
    scores = jnp.einsum('bqkh,h->bqk', feats, w_v[0])
    col = jnp.arange(scores.shape[-1])[None, None, :]
    masked = jnp.where(col < valid_lens[:, None, None], scores, -1e6)
    attw = jax.nn.softmax(masked, axis=-1)
    return jnp.einsum('bqk,bkv->bqv', attw, values)


if __name__ == "__main__":
    # Small deterministic problem: B=2, Q=8 queries, K=8 keys,
    # query_size=key_size=4, num_hiddens=32, value_dim=16, dropout=0.
    B, Q, K = 2, 8, 8
    Dq, Dk, Dv, H = 4, 4, 16, 32

    key = jax.random.PRNGKey(0)
    kq, kk, kv, kwq, kwk, kwv = jax.random.split(key, 6)

    queries = jax.random.normal(kq, (B, Q, Dq), dtype=jnp.float32)
    keys = jax.random.normal(kk, (B, K, Dk), dtype=jnp.float32)
    values = jax.random.normal(kv, (B, K, Dv), dtype=jnp.float32)
    valid_lens = jnp.array([5, 8], dtype=jnp.int32)

    # nn.Linear weight layouts: W_q (H, Dq), W_k (H, Dk), w_v (1, H), no biases.
    W_q = jax.random.uniform(kwq, (H, Dq), jnp.float32, -0.5, 0.5)
    W_k = jax.random.uniform(kwk, (H, Dk), jnp.float32, -0.5, 0.5)
    w_v = jax.random.uniform(kwv, (1, H), jnp.float32, -0.18, 0.18)

    use_bf16 = _default_use_bf16()
    out = additive_attention(queries, keys, values, valid_lens, W_q, W_k, w_v,
                             use_bf16=use_bf16)
    out = jax.block_until_ready(out)

    ref = additive_attention_ref(queries, keys, values, valid_lens, W_q, W_k, w_v)
    assert out.shape == (B, Q, Dv)
    tol = 5e-2 if use_bf16 else 1e-4       # bf16 tanh/matmul path on v6e/v7x
    assert jnp.allclose(out, ref, atol=tol, rtol=tol), "mismatch vs reference"

    print("KERNEL_OK")
</pallas_src>

<mosaic_0001>
module attributes {stable_mosaic.version = 11 : i64} {
  func.func @_additive_attn_kernel(%arg0: i32, %arg1: memref<2xi32, #tpu.memory_space<smem>>, %arg2: memref<2x8x4xf32, #tpu.memory_space<vmem>>, %arg3: memref<2x8x4xf32, #tpu.memory_space<vmem>>, %arg4: memref<2x8x128xf32, #tpu.memory_space<vmem>>, %arg5: memref<4x32xf32, #tpu.memory_space<vmem>>, %arg6: memref<4x32xf32, #tpu.memory_space<vmem>>, %arg7: memref<1x32xf32, #tpu.memory_space<vmem>>, %arg8: memref<2x8x128xf32, #tpu.memory_space<vmem>>, %arg9: memref<2x8x32xf32, #tpu.memory_space<vmem>>, %arg10: memref<8x1xf32, #tpu.memory_space<vmem>>, %arg11: memref<8x1xf32, #tpu.memory_space<vmem>>, %arg12: memref<8x128xf32, #tpu.memory_space<vmem>>) attributes {dimension_semantics = [#tpu.dimension_semantics<parallel>], iteration_bounds = array<i64: 1>, scalar_prefetch = 1 : i64, scratch_operands = 4 : i64, tpu.core_type = #tpu.core_type<tc>, window_params = [{transform_indices = @transform_0, window_bounds = array<i64: 2, 8, 4>}, {transform_indices = @transform_1, window_bounds = array<i64: 2, 8, 4>}, {transform_indices = @transform_2, window_bounds = array<i64: 2, 8, 128>}, {pipeline_mode = #tpu.pipeline_mode<synchronous>, transform_indices = @transform_3, window_bounds = array<i64: 4, 32>}, {pipeline_mode = #tpu.pipeline_mode<synchronous>, transform_indices = @transform_4, window_bounds = array<i64: 4, 32>}, {pipeline_mode = #tpu.pipeline_mode<synchronous>, transform_indices = @transform_5, window_bounds = array<i64: 1, 32>}, {transform_indices = @transform_6, window_bounds = array<i64: 2, 8, 128>}]} {
    %c0 = arith.constant 0 : index
    %c0_0 = arith.constant 0 : index
    %c0_1 = arith.constant 0 : index
    %0 = vector.load %arg2[%c0, %c0_0, %c0_1] : memref<2x8x4xf32, #tpu.memory_space<vmem>>, vector<2x8x4xf32>
    %1 = vector.shape_cast %0 : vector<2x8x4xf32> to vector<16x4xf32>
    %c0_2 = arith.constant 0 : index
    %c0_3 = arith.constant 0 : index
    %c0_4 = arith.constant 0 : index
    %2 = vector.load %arg3[%c0_2, %c0_3, %c0_4] : memref<2x8x4xf32, #tpu.memory_space<vmem>>, vector<2x8x4xf32>
    %3 = vector.shape_cast %2 : vector<2x8x4xf32> to vector<16x4xf32>
    %c0_5 = arith.constant 0 : index
    %c0_6 = arith.constant 0 : index
    %4 = vector.load %arg5[%c0_5, %c0_6] : memref<4x32xf32, #tpu.memory_space<vmem>>, vector<4x32xf32>
    %cst = arith.constant dense<0.000000e+00> : vector<16x32xf32>
    %5 = tpu.matmul %1, %4, %cst {dimension_numbers = #tpu.dot_dimension_numbers<[1], [0], [0], [1], [0, 0, 1, 1], [], []>} : vector<16x4xf32>, vector<4x32xf32>, vector<16x32xf32> -> vector<16x32xf32>
    %c0_7 = arith.constant 0 : index
    %c0_8 = arith.constant 0 : index
    %6 = vector.load %arg6[%c0_7, %c0_8] : memref<4x32xf32, #tpu.memory_space<vmem>>, vector<4x32xf32>
    %cst_9 = arith.constant dense<0.000000e+00> : vector<16x32xf32>
    %7 = tpu.matmul %3, %6, %cst_9 {dimension_numbers = #tpu.dot_dimension_numbers<[1], [0], [0], [1], [0, 0, 1, 1], [], []>} : vector<16x4xf32>, vector<4x32xf32>, vector<16x32xf32> -> vector<16x32xf32>
    %8 = vector.shape_cast %5 : vector<16x32xf32> to vector<2x8x32xf32>
    %9 = vector.shape_cast %7 : vector<16x32xf32> to vector<2x8x32xf32>
    %c0_10 = arith.constant 0 : index
    %c0_11 = arith.constant 0 : index
    %c0_12 = arith.constant 0 : index
    %10 = vector.load %arg9[%c0_10, %c0_11, %c0_12] : memref<2x8x32xf32, #tpu.memory_space<vmem>>, vector<2x8x32xf32>
    tpu.vector_store %arg9[%c0_10, %c0_11, %c0_12], %9 {strides = array<i32>} : memref<2x8x32xf32, #tpu.memory_space<vmem>>, vector<2x8x32xf32>,
    %c0_13 = arith.constant 0 : index
    %c0_14 = arith.constant 0 : index
    %11 = vector.load %arg7[%c0_13, %c0_14] : memref<1x32xf32, #tpu.memory_space<vmem>>, vector<1x32xf32>
    %12 = vector.shape_cast %11 : vector<1x32xf32> to vector<1x1x32xf32>
    %c2_i32 = arith.constant 2 : i32
    %13 = arith.muli %arg0, %c2_i32 : i32
    %c0_i32 = arith.constant 0 : i32
    %14 = arith.addi %13, %c0_i32 : i32
    %15 = arith.index_cast %14 : i32 to index
    %16 = memref.load %arg1[%15] : memref<2xi32, #tpu.memory_space<smem>>
    %17 = vector.extract_strided_slice %8 {offsets = [0, 0, 0], sizes = [1, 8, 32], strides = [1, 1, 1]} : vector<2x8x32xf32> to vector<1x8x32xf32>
    %18 = vector.shape_cast %17 : vector<1x8x32xf32> to vector<8x32xf32>
    %cst_15 = arith.constant -1.000000e+30 : f32
    %19 = vector.broadcast %cst_15 : f32 to vector<8x1xf32>
    %c0_16 = arith.constant 0 : index
    %c0_17 = arith.constant 0 : index
    %20 = vector.load %arg10[%c0_16, %c0_17] : memref<8x1xf32, #tpu.memory_space<vmem>>, vector<8x1xf32>
    tpu.vector_store %arg10[%c0_16, %c0_17], %19 {strides = array<i32>} : memref<8x1xf32, #tpu.memory_space<vmem>>, vector<8x1xf32>,
    %cst_18 = arith.constant 0.000000e+00 : f32
    %21 = vector.broadcast %cst_18 : f32 to vector<8x1xf32>
    %c0_19 = arith.constant 0 : index
    %c0_20 = arith.constant 0 : index
    %22 = vector.load %arg11[%c0_19, %c0_20] : memref<8x1xf32, #tpu.memory_space<vmem>>, vector<8x1xf32>
    tpu.vector_store %arg11[%c0_19, %c0_20], %21 {strides = array<i32>} : memref<8x1xf32, #tpu.memory_space<vmem>>, vector<8x1xf32>,
    %cst_21 = arith.constant 0.000000e+00 : f32
    %23 = vector.broadcast %cst_21 : f32 to vector<8x128xf32>
    %c0_22 = arith.constant 0 : index
    %c0_23 = arith.constant 0 : index
    %24 = vector.load %arg12[%c0_22, %c0_23] : memref<8x128xf32, #tpu.memory_space<vmem>>, vector<8x128xf32>
    tpu.vector_store %arg12[%c0_22, %c0_23], %23 {strides = array<i32>} : memref<8x128xf32, #tpu.memory_space<vmem>>, vector<8x128xf32>,
    %c0_i32_24 = arith.constant 0 : i32
    %c1_i32 = arith.constant 1 : i32
    %25 = arith.muli %c0_i32_24, %c1_i32 : i32
    %c0_i32_25 = arith.constant 0 : i32
    %26 = arith.addi %c0_i32_25, %25 : i32
    %c8_i32 = arith.constant 8 : i32
    %27 = arith.muli %26, %c8_i32 : i32
    %28 = tpu.assume_multiple %27, 8 : i32
    %29 = arith.cmpi slt, %28, %16 : i32
    %30 = arith.extui %29 : i1 to i32
    %c0_i32_26 = arith.constant 0 : i32
    %31 = arith.cmpi ne, %30, %c0_i32_26 : i32
    scf.if %31 {
      %c0_58 = arith.constant 0 : index
      %67 = arith.index_cast %28 : i32 to index
      %c0_59 = arith.constant 0 : index
      %68 = vector.load %arg9[%c0_58, %67, %c0_59] : memref<2x8x32xf32, #tpu.memory_space<vmem>>, vector<1x8x32xf32>
      %69 = vector.shape_cast %68 : vector<1x8x32xf32> to vector<8x32xf32>
      %70 = vector.shape_cast %18 : vector<8x32xf32> to vector<8x1x32xf32>
      %71 = vector.shape_cast %69 : vector<8x32xf32> to vector<1x8x32xf32>
      %72 = vector.broadcast %70 : vector<8x1x32xf32> to vector<8x8x32xf32>
      %73 = vector.broadcast %71 : vector<1x8x32xf32> to vector<8x8x32xf32>
      %74 = arith.addf %72, %73 : vector<8x8x32xf32>
      %75 = math.tanh %74 : vector<8x8x32xf32>
      %76 = vector.broadcast %12 : vector<1x1x32xf32> to vector<8x8x32xf32>
      %77 = arith.mulf %75, %76 : vector<8x8x32xf32>
      %cst_60 = arith.constant dense<0.000000e+00> : vector<8x8xf32>
      %78 = vector.multi_reduction <add>, %77, %cst_60 [2] : vector<8x8x32xf32> to vector<8x8xf32>
      %79 = tpu.iota {dimensions = array<i32: 1>} : vector<8x8xi32>
      %80 = vector.broadcast %28 : i32 to vector<8x8xi32>
      %81 = arith.addi %80, %79 : vector<8x8xi32>
      %82 = vector.broadcast %16 : i32 to vector<8x8xi32>
      %83 = arith.cmpi slt, %81, %82 : vector<8x8xi32>
      %cst_61 = arith.constant -1.000000e+06 : f32
      %84 = vector.broadcast %cst_61 : f32 to vector<8x8xf32>
      %85 = arith.select %83, %78, %84 : vector<8x8xi1>, vector<8x8xf32>
      %c0_62 = arith.constant 0 : index
      %c0_63 = arith.constant 0 : index
      %86 = vector.load %arg10[%c0_62, %c0_63] : memref<8x1xf32, #tpu.memory_space<vmem>>, vector<8x1xf32>
      %cst_64 = arith.constant dense<0xFF800000> : vector<8xf32>
      %87 = vector.multi_reduction <maximumf>, %85, %cst_64 [1] : vector<8x8xf32> to vector<8xf32>
      %88 = vector.shape_cast %87 : vector<8xf32> to vector<8x1xf32>
      %89 = arith.maximumf %86, %88 : vector<8x1xf32>
      %90 = arith.subf %86, %89 : vector<8x1xf32>
      %91 = math.exp %90 : vector<8x1xf32>
      %92 = vector.broadcast %89 : vector<8x1xf32> to vector<8x8xf32>
      %93 = arith.subf %85, %92 : vector<8x8xf32>
      %94 = math.exp %93 : vector<8x8xf32>
      %c0_65 = arith.constant 0 : index
      %c0_66 = arith.constant 0 : index
      %95 = vector.load %arg11[%c0_65, %c0_66] : memref<8x1xf32, #tpu.memory_space<vmem>>, vector<8x1xf32>
      %96 = arith.mulf %91, %95 : vector<8x1xf32>
      %cst_67 = arith.constant dense<0.000000e+00> : vector<8xf32>
      %97 = vector.multi_reduction <add>, %94, %cst_67 [1] : vector<8x8xf32> to vector<8xf32>
      %98 = vector.shape_cast %97 : vector<8xf32> to vector<8x1xf32>
      %99 = arith.addf %96, %98 : vector<8x1xf32>
      %c0_68 = arith.constant 0 : index
      %c0_69 = arith.constant 0 : index
      %100 = vector.load %arg11[%c0_68, %c0_69] : memref<8x1xf32, #tpu.memory_space<vmem>>, vector<8x1xf32>
      tpu.vector_store %arg11[%c0_68, %c0_69], %99 {strides = array<i32>} : memref<8x1xf32, #tpu.memory_space<vmem>>, vector<8x1xf32>,
      %c0_70 = arith.constant 0 : index
      %101 = arith.index_cast %28 : i32 to index
      %c0_71 = arith.constant 0 : index
      %102 = vector.load %arg4[%c0_70, %101, %c0_71] : memref<2x8x128xf32, #tpu.memory_space<vmem>>, vector<1x8x128xf32>
      %103 = vector.shape_cast %102 : vector<1x8x128xf32> to vector<8x128xf32>
      %c0_72 = arith.constant 0 : index
      %c0_73 = arith.constant 0 : index
      %104 = vector.load %arg12[%c0_72, %c0_73] : memref<8x128xf32, #tpu.memory_space<vmem>>, vector<8x128xf32>
      %105 = vector.broadcast %91 : vector<8x1xf32> to vector<8x128xf32>
      %106 = arith.mulf %105, %104 : vector<8x128xf32>
      %cst_74 = arith.constant dense<0.000000e+00> : vector<8x128xf32>
      %107 = tpu.matmul %94, %103, %cst_74 {dimension_numbers = #tpu.dot_dimension_numbers<[1], [0], [0], [1], [0, 0, 1, 1], [], []>} : vector<8x8xf32>, vector<8x128xf32>, vector<8x128xf32> -> vector<8x128xf32>
      %108 = arith.addf %106, %107 : vector<8x128xf32>
      %c0_75 = arith.constant 0 : index
      %c0_76 = arith.constant 0 : index
      %109 = vector.load %arg12[%c0_75, %c0_76] : memref<8x128xf32, #tpu.memory_space<vmem>>, vector<8x128xf32>
      tpu.vector_store %arg12[%c0_75, %c0_76], %108 {strides = array<i32>} : memref<8x128xf32, #tpu.memory_space<vmem>>, vector<8x128xf32>,
      %c0_77 = arith.constant 0 : index
      %c0_78 = arith.constant 0 : index
      %110 = vector.load %arg10[%c0_77, %c0_78] : memref<8x1xf32, #tpu.memory_space<vmem>>, vector<8x1xf32>
      tpu.vector_store %arg10[%c0_77, %c0_78], %89 {strides = array<i32>} : memref<8x1xf32, #tpu.memory_space<vmem>>, vector<8x1xf32>,
    } else {
    }
    %c1_i32_27 = arith.constant 1 : i32
    %c0_28 = arith.constant 0 : index
    %c0_29 = arith.constant 0 : index
    %32 = vector.load %arg11[%c0_28, %c0_29] : memref<8x1xf32, #tpu.memory_space<vmem>>, vector<8x1xf32>
    %33 = tpu.reciprocal %32 : vector<8x1xf32> -> vector<8x1xf32>
    %c0_30 = arith.constant 0 : index
    %c0_31 = arith.constant 0 : index
    %34 = vector.load %arg12[%c0_30, %c0_31] : memref<8x128xf32, #tpu.memory_space<vmem>>, vector<8x128xf32>
    %35 = vector.broadcast %33 : vector<8x1xf32> to vector<8x128xf32>
    %36 = arith.mulf %34, %35 : vector<8x128xf32>
    %c0_32 = arith.constant 0 : index
    %c0_33 = arith.constant 0 : index
    %c0_34 = arith.constant 0 : index
    %37 = vector.load %arg8[%c0_32, %c0_33, %c0_34] : memref<2x8x128xf32, #tpu.memory_space<vmem>>, vector<1x8x128xf32>
    %38 = vector.shape_cast %37 : vector<1x8x128xf32> to vector<8x128xf32>
    %39 = vector.shape_cast %36 : vector<8x128xf32> to vector<1x8x128xf32>
    tpu.vector_store %arg8[%c0_32, %c0_33, %c0_34], %39 {strides = array<i32>} : memref<2x8x128xf32, #tpu.memory_space<vmem>>, vector<1x8x128xf32>,
    %c2_i32_35 = arith.constant 2 : i32
    %40 = arith.muli %arg0, %c2_i32_35 : i32
    %c1_i32_36 = arith.constant 1 : i32
    %41 = arith.addi %40, %c1_i32_36 : i32
    %42 = arith.index_cast %41 : i32 to index
    %43 = memref.load %arg1[%42] : memref<2xi32, #tpu.memory_space<smem>>
    %44 = vector.extract_strided_slice %8 {offsets = [1, 0, 0], sizes = [1, 8, 32], strides = [1, 1, 1]} : vector<2x8x32xf32> to vector<1x8x32xf32>
    %45 = vector.shape_cast %44 : vector<1x8x32xf32> to vector<8x32xf32>
    %cst_37 = arith.constant -1.000000e+30 : f32
    %46 = vector.broadcast %cst_37 : f32 to vector<8x1xf32>
    %c0_38 = arith.constant 0 : index
    %c0_39 = arith.constant 0 : index
    %47 = vector.load %arg10[%c0_38, %c0_39] : memref<8x1xf32, #tpu.memory_space<vmem>>, vector<8x1xf32>
    tpu.vector_store %arg10[%c0_38, %c0_39], %46 {strides = array<i32>} : memref<8x1xf32, #tpu.memory_space<vmem>>, vector<8x1xf32>,
    %cst_40 = arith.constant 0.000000e+00 : f32
    %48 = vector.broadcast %cst_40 : f32 to vector<8x1xf32>
    %c0_41 = arith.constant 0 : index
    %c0_42 = arith.constant 0 : index
    %49 = vector.load %arg11[%c0_41, %c0_42] : memref<8x1xf32, #tpu.memory_space<vmem>>, vector<8x1xf32>
    tpu.vector_store %arg11[%c0_41, %c0_42], %48 {strides = array<i32>} : memref<8x1xf32, #tpu.memory_space<vmem>>, vector<8x1xf32>,
    %cst_43 = arith.constant 0.000000e+00 : f32
    %50 = vector.broadcast %cst_43 : f32 to vector<8x128xf32>
    %c0_44 = arith.constant 0 : index
    %c0_45 = arith.constant 0 : index
    %51 = vector.load %arg12[%c0_44, %c0_45] : memref<8x128xf32, #tpu.memory_space<vmem>>, vector<8x128xf32>
    tpu.vector_store %arg12[%c0_44, %c0_45], %50 {strides = array<i32>} : memref<8x128xf32, #tpu.memory_space<vmem>>, vector<8x128xf32>,
    %c0_i32_46 = arith.constant 0 : i32
    %c1_i32_47 = arith.constant 1 : i32
    %52 = arith.muli %c0_i32_46, %c1_i32_47 : i32
    %c0_i32_48 = arith.constant 0 : i32
    %53 = arith.addi %c0_i32_48, %52 : i32
    %c8_i32_49 = arith.constant 8 : i32
    %54 = arith.muli %53, %c8_i32_49 : i32
    %55 = tpu.assume_multiple %54, 8 : i32
    %56 = arith.cmpi slt, %55, %43 : i32
    %57 = arith.extui %56 : i1 to i32
    %c0_i32_50 = arith.constant 0 : i32
    %58 = arith.cmpi ne, %57, %c0_i32_50 : i32
    scf.if %58 {
      %c1_58 = arith.constant 1 : index
      %67 = arith.index_cast %55 : i32 to index
      %c0_59 = arith.constant 0 : index
      %68 = vector.load %arg9[%c1_58, %67, %c0_59] : memref<2x8x32xf32, #tpu.memory_space<vmem>>, vector<1x8x32xf32>
      %69 = vector.shape_cast %68 : vector<1x8x32xf32> to vector<8x32xf32>
      %70 = vector.shape_cast %45 : vector<8x32xf32> to vector<8x1x32xf32>
      %71 = vector.shape_cast %69 : vector<8x32xf32> to vector<1x8x32xf32>
      %72 = vector.broadcast %70 : vector<8x1x32xf32> to vector<8x8x32xf32>
      %73 = vector.broadcast %71 : vector<1x8x32xf32> to vector<8x8x32xf32>
      %74 = arith.addf %72, %73 : vector<8x8x32xf32>
      %75 = math.tanh %74 : vector<8x8x32xf32>
      %76 = vector.broadcast %12 : vector<1x1x32xf32> to vector<8x8x32xf32>
      %77 = arith.mulf %75, %76 : vector<8x8x32xf32>
      %cst_60 = arith.constant dense<0.000000e+00> : vector<8x8xf32>
      %78 = vector.multi_reduction <add>, %77, %cst_60 [2] : vector<8x8x32xf32> to vector<8x8xf32>
      %79 = tpu.iota {dimensions = array<i32: 1>} : vector<8x8xi32>
      %80 = vector.broadcast %55 : i32 to vector<8x8xi32>
      %81 = arith.addi %80, %79 : vector<8x8xi32>
      %82 = vector.broadcast %43 : i32 to vector<8x8xi32>
      %83 = arith.cmpi slt, %81, %82 : vector<8x8xi32>
      %cst_61 = arith.constant -1.000000e+06 : f32
      %84 = vector.broadcast %cst_61 : f32 to vector<8x8xf32>
      %85 = arith.select %83, %78, %84 : vector<8x8xi1>, vector<8x8xf32>
      %c0_62 = arith.constant 0 : index
      %c0_63 = arith.constant 0 : index
      %86 = vector.load %arg10[%c0_62, %c0_63] : memref<8x1xf32, #tpu.memory_space<vmem>>, vector<8x1xf32>
      %cst_64 = arith.constant dense<0xFF800000> : vector<8xf32>
      %87 = vector.multi_reduction <maximumf>, %85, %cst_64 [1] : vector<8x8xf32> to vector<8xf32>
      %88 = vector.shape_cast %87 : vector<8xf32> to vector<8x1xf32>
      %89 = arith.maximumf %86, %88 : vector<8x1xf32>
      %90 = arith.subf %86, %89 : vector<8x1xf32>
      %91 = math.exp %90 : vector<8x1xf32>
      %92 = vector.broadcast %89 : vector<8x1xf32> to vector<8x8xf32>
      %93 = arith.subf %85, %92 : vector<8x8xf32>
      %94 = math.exp %93 : vector<8x8xf32>
      %c0_65 = arith.constant 0 : index
      %c0_66 = arith.constant 0 : index
      %95 = vector.load %arg11[%c0_65, %c0_66] : memref<8x1xf32, #tpu.memory_space<vmem>>, vector<8x1xf32>
      %96 = arith.mulf %91, %95 : vector<8x1xf32>
      %cst_67 = arith.constant dense<0.000000e+00> : vector<8xf32>
      %97 = vector.multi_reduction <add>, %94, %cst_67 [1] : vector<8x8xf32> to vector<8xf32>
      %98 = vector.shape_cast %97 : vector<8xf32> to vector<8x1xf32>
      %99 = arith.addf %96, %98 : vector<8x1xf32>
      %c0_68 = arith.constant 0 : index
      %c0_69 = arith.constant 0 : index
      %100 = vector.load %arg11[%c0_68, %c0_69] : memref<8x1xf32, #tpu.memory_space<vmem>>, vector<8x1xf32>
      tpu.vector_store %arg11[%c0_68, %c0_69], %99 {strides = array<i32>} : memref<8x1xf32, #tpu.memory_space<vmem>>, vector<8x1xf32>,
      %c1_70 = arith.constant 1 : index
      %101 = arith.index_cast %55 : i32 to index
      %c0_71 = arith.constant 0 : index
      %102 = vector.load %arg4[%c1_70, %101, %c0_71] : memref<2x8x128xf32, #tpu.memory_space<vmem>>, vector<1x8x128xf32>
      %103 = vector.shape_cast %102 : vector<1x8x128xf32> to vector<8x128xf32>
      %c0_72 = arith.constant 0 : index
      %c0_73 = arith.constant 0 : index
      %104 = vector.load %arg12[%c0_72, %c0_73] : memref<8x128xf32, #tpu.memory_space<vmem>>, vector<8x128xf32>
      %105 = vector.broadcast %91 : vector<8x1xf32> to vector<8x128xf32>
      %106 = arith.mulf %105, %104 : vector<8x128xf32>
      %cst_74 = arith.constant dense<0.000000e+00> : vector<8x128xf32>
      %107 = tpu.matmul %94, %103, %cst_74 {dimension_numbers = #tpu.dot_dimension_numbers<[1], [0], [0], [1], [0, 0, 1, 1], [], []>} : vector<8x8xf32>, vector<8x128xf32>, vector<8x128xf32> -> vector<8x128xf32>
      %108 = arith.addf %106, %107 : vector<8x128xf32>
      %c0_75 = arith.constant 0 : index
      %c0_76 = arith.constant 0 : index
      %109 = vector.load %arg12[%c0_75, %c0_76] : memref<8x128xf32, #tpu.memory_space<vmem>>, vector<8x128xf32>
      tpu.vector_store %arg12[%c0_75, %c0_76], %108 {strides = array<i32>} : memref<8x128xf32, #tpu.memory_space<vmem>>, vector<8x128xf32>,
      %c0_77 = arith.constant 0 : index
      %c0_78 = arith.constant 0 : index
      %110 = vector.load %arg10[%c0_77, %c0_78] : memref<8x1xf32, #tpu.memory_space<vmem>>, vector<8x1xf32>
      tpu.vector_store %arg10[%c0_77, %c0_78], %89 {strides = array<i32>} : memref<8x1xf32, #tpu.memory_space<vmem>>, vector<8x1xf32>,
    } else {
    }
    %c1_i32_51 = arith.constant 1 : i32
    %c0_52 = arith.constant 0 : index
    %c0_53 = arith.constant 0 : index
    %59 = vector.load %arg11[%c0_52, %c0_53] : memref<8x1xf32, #tpu.memory_space<vmem>>, vector<8x1xf32>
    %60 = tpu.reciprocal %59 : vector<8x1xf32> -> vector<8x1xf32>
    %c0_54 = arith.constant 0 : index
    %c0_55 = arith.constant 0 : index
    %61 = vector.load %arg12[%c0_54, %c0_55] : memref<8x128xf32, #tpu.memory_space<vmem>>, vector<8x128xf32>
    %62 = vector.broadcast %60 : vector<8x1xf32> to vector<8x128xf32>
    %63 = arith.mulf %61, %62 : vector<8x128xf32>
    %c1 = arith.constant 1 : index
    %c0_56 = arith.constant 0 : index
    %c0_57 = arith.constant 0 : index
    %64 = vector.load %arg8[%c1, %c0_56, %c0_57] : memref<2x8x128xf32, #tpu.memory_space<vmem>>, vector<1x8x128xf32>
    %65 = vector.shape_cast %64 : vector<1x8x128xf32> to vector<8x128xf32>
    %66 = vector.shape_cast %63 : vector<8x128xf32> to vector<1x8x128xf32>
    tpu.vector_store %arg8[%c1, %c0_56, %c0_57], %66 {strides = array<i32>} : memref<2x8x128xf32, #tpu.memory_space<vmem>>, vector<1x8x128xf32>,
    return
  }
  func.func @transform_0(%arg0: i32, %arg1: memref<2xi32, #tpu.memory_space<smem>>) -> (i32, i32, i32) {
    %c0_i32 = arith.constant 0 : i32
    %c0_i32_0 = arith.constant 0 : i32
    %c0_i32_1 = arith.constant 0 : i32
    return %arg0, %c0_i32, %c0_i32_0 : i32, i32, i32
  }
  func.func @transform_1(%arg0: i32, %arg1: memref<2xi32, #tpu.memory_space<smem>>) -> (i32, i32, i32) {
    %c0_i32 = arith.constant 0 : i32
    %c0_i32_0 = arith.constant 0 : i32
    %c0_i32_1 = arith.constant 0 : i32
    return %arg0, %c0_i32, %c0_i32_0 : i32, i32, i32
  }
  func.func @transform_2(%arg0: i32, %arg1: memref<2xi32, #tpu.memory_space<smem>>) -> (i32, i32, i32) {
    %c0_i32 = arith.constant 0 : i32
    %c0_i32_0 = arith.constant 0 : i32
    %c0_i32_1 = arith.constant 0 : i32
    return %arg0, %c0_i32, %c0_i32_0 : i32, i32, i32
  }
  func.func @transform_3(%arg0: i32, %arg1: memref<2xi32, #tpu.memory_space<smem>>) -> (i32, i32) {
    %c0_i32 = arith.constant 0 : i32
    %c0_i32_0 = arith.constant 0 : i32
    %c0_i32_1 = arith.constant 0 : i32
    return %c0_i32, %c0_i32_0 : i32, i32
  }
  func.func @transform_4(%arg0: i32, %arg1: memref<2xi32, #tpu.memory_space<smem>>) -> (i32, i32) {
    %c0_i32 = arith.constant 0 : i32
    %c0_i32_0 = arith.constant 0 : i32
    %c0_i32_1 = arith.constant 0 : i32
    return %c0_i32, %c0_i32_0 : i32, i32
  }
  func.func @transform_5(%arg0: i32, %arg1: memref<2xi32, #tpu.memory_space<smem>>) -> (i32, i32) {
    %c0_i32 = arith.constant 0 : i32
    %c0_i32_0 = arith.constant 0 : i32
    %c0_i32_1 = arith.constant 0 : i32
    return %c0_i32, %c0_i32_0 : i32, i32
  }
  func.func @transform_6(%arg0: i32, %arg1: memref<2xi32, #tpu.memory_space<smem>>) -> (i32, i32, i32) {
    %c0_i32 = arith.constant 0 : i32
    %c0_i32_0 = arith.constant 0 : i32
    %c0_i32_1 = arith.constant 0 : i32
    return %arg0, %c0_i32, %c0_i32_0 : i32, i32, i32
  }
}

</mosaic_0001>

<llo_original>
// kernel: tpu_custom_call.1
$region0: #{tpu_custom_call.1}
  #allocation0 [shape = 'u32[]', space=smem, size = 0x4, offset = 0x4, fixed_abs, tag = 'smem constant byte address 0x4 - core index']
  #allocation1 [shape = 'u32[72,128]{1,0:T(1,128)}', space=vmem, size = 0x9000, scoped, tag = 'internal scratch']
  #allocation2 [shape = 'f32[2,8,32]{2,1,0:T(8,128)}', space=vmem, size = 0x2000, scoped, tag = 'scratch operand']
  #allocation3 [shape = 'f32[8,1]{1,0:T(8,128)}', space=vmem, size = 0x1000, scoped, tag = 'scratch operand']
  #allocation4 [shape = 'f32[8,1]{1,0:T(8,128)}', space=vmem, size = 0x1000, scoped, tag = 'scratch operand']
  #allocation5 [shape = 'f32[8,128]{1,0:T(8,128)}', space=vmem, size = 0x1000, scoped, tag = 'scratch operand']
  #allocation6 [shape = 's32[1]{0}', space=sflag, size = 0x4, scoped, tag = 'scoped memory for tpu_custom_call.1']
  #allocation7 [shape = 'u8[512]{0}', space=smem, size = 0x200, scoped, tag = 'prefetched SMEM operand 0']
  %s0 = inlined_call_operand.vmem [shape: s32[2], index: 0, kind: input, shape index: {}]
  %s1 = inlined_call_operand.vmem [shape: f32[2,8,4], index: 1, kind: input, shape index: {}]
  %s2 = inlined_call_operand.vmem [shape: f32[2,8,4], index: 2, kind: input, shape index: {}]
  %s3 = inlined_call_operand.vmem [shape: f32[2,8,128], index: 3, kind: input, shape index: {}]
  %s4 = inlined_call_operand.vmem [shape: f32[4,32], index: 4, kind: input, shape index: {}]
  %s5 = inlined_call_operand.vmem [shape: f32[4,32], index: 5, kind: input, shape index: {}]
  %s6 = inlined_call_operand.vmem [shape: f32[1,32], index: 6, kind: input, shape index: {}]
  %s7 = inlined_call_operand.hbm [shape: f32[2,8,128], index: 7, kind: output, shape index: {}]
  %s8 = sld [smem:[#allocation0]]
  $region42: #{tpu_custom_call.1} parent=0
    _
  %s10 = ssub.s32 1, %s8
  %s11 = scalar_select 0, %s10, %s8
  %s13 = sshll.u32 %s0, 4
  %s14 = int_to_ptr.vmem [resolvable:$true] %s13
  %16 = dma.vmem_to_smem %s14, 16, [#allocation7], [#allocation6]
  %18 = dma.done [#allocation6], 16
  %19 = sfence
  $region1: #{tpu_custom_call.1} parent=0
    #allocation8 [shape = 'u8[8192]{0}', space=vmem, size = 0x2000, scoped, tag = 'output window, operand 0, single buffered']
    #allocation9 [shape = 's32[1]{0}', space=sflag, size = 0x4, scoped, tag = 'scoped memory for tpu_custom_call.1']
    %20 = vsyncpa [#allocation9], 0
    // Predicated region
    $region2: #{tpu_custom_call.1} parent=1 // pred_check
      _
    $region3: #{tpu_custom_call.1} parent=1 // pred_check_branch
      %22 = sbr.rel (0) target = $region5
    $region4: #{tpu_custom_call.1} parent=1 // pred_region
      _
    $region5: #{tpu_custom_call.1} parent=1 // pred_fallthru
      _
    // Predicated region
    $region6: #{tpu_custom_call.1} parent=1 // pred_check
      _
    $region7: #{tpu_custom_call.1} parent=1 // pred_check_branch
      %24 = sbr.rel (0) target = $region9
    $region8: #{tpu_custom_call.1} parent=1 // pred_region
      _
    $region9: #{tpu_custom_call.1} parent=1 // pred_fallthru
      _
    // Predicated region
    $region10: #{tpu_custom_call.1} parent=1 // pred_check
      _
    $region11: #{tpu_custom_call.1} parent=1 // pred_check_branch
      %26 = sbr.rel (0) target = $region13
    $region12: #{tpu_custom_call.1} parent=1 // pred_region
      _
    $region13: #{tpu_custom_call.1} parent=1 // pred_fallthru
      _
    // Predicated region
    $region14: #{tpu_custom_call.1} parent=1 // pred_check
      _
    $region15: #{tpu_custom_call.1} parent=1 // pred_check_branch
      %28 = sbr.rel (0) target = $region17
    $region16: #{tpu_custom_call.1} parent=1 // pred_region
      _
    $region17: #{tpu_custom_call.1} parent=1 // pred_fallthru
      _
    // Predicated region
    $region18: #{tpu_custom_call.1} parent=1 // pred_check
      _
    $region19: #{tpu_custom_call.1} parent=1 // pred_check_branch
      %30 = sbr.rel (0) target = $region21
    $region20: #{tpu_custom_call.1} parent=1 // pred_region
      _
    $region21: #{tpu_custom_call.1} parent=1 // pred_fallthru
      _
    // Predicated region
    $region22: #{tpu_custom_call.1} parent=1 // pred_check
      _
    $region23: #{tpu_custom_call.1} parent=1 // pred_check_branch
      %32 = sbr.rel (0) target = $region25
    $region24: #{tpu_custom_call.1} parent=1 // pred_region
      _
    $region25: #{tpu_custom_call.1} parent=1 // pred_fallthru
      _
    %v33 = vld [vmem:[%s1] sm:$0xff]
    %v34 = vld [vmem:[%s1 + $0x8] sm:$0xff]
    %v35 = vld [vmem:[%s2] sm:$0xff]
    %v36 = vld [vmem:[%s2 + $0x8] sm:$0xff]
    %v37 = vld [vmem:[%s4] sm:$0xf]
    %vm38 = vcmask 31744
    %v40 = vsel %vm38, %v33, 0
    %v43 = vsel %vm38, %v34, 0
    %vm45 = vcmask 1043456
    %v47 = vsel %vm45, %v37, 0
    %49 = vmatpush.msra.mxu0 0.0
    %50 = vmatpush.msra.mxu0 0.0
    %51 = vmatpush.msra.mxu0 0.0
    %52 = vmatpush.msra.mxu0 0.0
    %53 = vmatpush.msra.mxu0 0.0
    %54 = vmatpush.msra.mxu0 0.0
    %55 = vmatpush.msra.mxu0 0.0
    %56 = vmatpush.msra.mxu0 0.0
    %57 = vmatpush.msra.mxu0 0.0
    %58 = vmatpush.msra.mxu0 0.0
    %59 = vmatpush.msra.mxu0 0.0
    %60 = vmatpush.msra.mxu0 0.0
    %61 = vmatpush.msra.mxu0 0.0
    %62 = vmatpush.msra.mxu0 0.0
    %63 = vmatpush.msra.mxu0 0.0
    %64 = vmatpush.msra.mxu0 %v47
    %65 = vmatmul.f32.gmra.mxu0 %v40
    %v66 = vpop.f32.mrf.mxu0
    %v67 = vadd.f32 0.0, %v66
    %68 = vmatmul.f32.gmra.mxu0 %v43
    %v69 = vpop.f32.mrf.mxu0
    %v70 = vadd.f32 0.0, %v69
    %71 = vdwg.mxu0
    %v72 = vld [vmem:[%s5] sm:$0xf]
    %v74 = vsel %vm38, %v35, 0
    %v77 = vsel %vm38, %v36, 0
    %v80 = vsel %vm45, %v72, 0
    %82 = vmatpush.msra.mxu0 0.0
    %83 = vmatpush.msra.mxu0 0.0
    %84 = vmatpush.msra.mxu0 0.0
    %85 = vmatpush.msra.mxu0 0.0
    %86 = vmatpush.msra.mxu0 0.0
    %87 = vmatpush.msra.mxu0 0.0
    %88 = vmatpush.msra.mxu0 0.0
    %89 = vmatpush.msra.mxu0 0.0
    %90 = vmatpush.msra.mxu0 0.0
    %91 = vmatpush.msra.mxu0 0.0
    %92 = vmatpush.msra.mxu0 0.0
    %93 = vmatpush.msra.mxu0 0.0
    %94 = vmatpush.msra.mxu0 0.0
    %95 = vmatpush.msra.mxu0 0.0
    %96 = vmatpush.msra.mxu0 0.0
    %97 = vmatpush.msra.mxu0 %v80
    %98 = vmatmul.f32.gmra.mxu0 %v74
    %v99 = vpop.f32.mrf.mxu0
    %v100 = vadd.f32 0.0, %v99
    %101 = vmatmul.f32.gmra.mxu0 %v77
    %v102 = vpop.f32.mrf.mxu0
    %v103 = vadd.f32 0.0, %v102
    %104 = vdwg.mxu0
    %vm105 = vcmask 261120
    %106 = vst.msk [vmem:[#allocation2] sm:$0xff] %vm105, %v100
    %107 = vst.msk [vmem:[#allocation2 + $0x8] sm:$0xff] %vm105, %v103
    %v108 = vld [vmem:[%s6] sm:$0x1]
    %s109 = smul.u32 0, 2
    %s110 = sld [smem:[#allocation7 + %s109]]
    %vm111 = vcmask 7168
    %112 = vst.msk [vmem:[#allocation3] sm:$0xff] %vm111, -1e+30
    %113 = vst.msk [vmem:[#allocation4] sm:$0xff] %vm111, 0.0
    %114 = vst [vmem:[#allocation5] sm:$0xff] 0.0
    %p115 = scmp.lt.s32.totalorder 0, %s110
    // Predicated region
    $region26: #{tpu_custom_call.1} parent=1 // pred_check
      %p116 = pneg %p115
    $region27: #{tpu_custom_call.1} parent=1 // pred_check_branch
      %118 = sbr.rel (%p116) target = $region29
    $region28: #{tpu_custom_call.1} parent=1 // pred_region
      %v119 = vld [vmem:[#allocation2] sm:$0xff]
      %v121 = vrot.slane %v67, 1
      %v122 = vrot.slane %v67, 2
      %v123 = vrot.slane %v67, 3
      %v124 = vrot.slane %v67, 4
      %v125 = vrot.slane %v67, 5
      %v126 = vrot.slane %v67, 6
      %v127 = vrot.slane %v67, 7
      %v128 = vperm.slane %v67, 0
      %v129 = vperm.slane %v121, 0
      %v130 = vperm.slane %v122, 0
      %v131 = vperm.slane %v123, 0
      %v132 = vperm.slane %v124, 0
      %v133 = vperm.slane %v125, 0
      %v134 = vperm.slane %v126, 0
      %v135 = vperm.slane %v127, 0
      %v144 = vadd.f32 %v128, %v119
      %v145 = vadd.f32 %v129, %v119
      %v146 = vadd.f32 %v130, %v119
      %v147 = vadd.f32 %v131, %v119
      %v148 = vadd.f32 %v132, %v119
      %v149 = vadd.f32 %v133, %v119
      %v150 = vadd.f32 %v134, %v119
      %v151 = vadd.f32 %v135, %v119
      %v152 = vtanh.pop %v144
      %v153 = vtanh.pop %v145
      %v154 = vtanh.pop %v146
      %v155 = vtanh.pop %v147
      %v156 = vtanh.pop %v148
      %v157 = vtanh.pop %v149
      %v158 = vtanh.pop %v150
      %v159 = vtanh.pop %v151
      %v161 = vperm.slane %v108, 0
      %v163 = vmul.f32 %v152, %v161
      %v164 = vmul.f32 %v153, %v161
      %v165 = vmul.f32 %v154, %v161
      %v166 = vmul.f32 %v155, %v161
      %v167 = vmul.f32 %v156, %v161
      %v168 = vmul.f32 %v157, %v161
      %v169 = vmul.f32 %v158, %v161
      %v170 = vmul.f32 %v159, %v161
      %v171 = vsel %vm105, %v163, 0.0
      %172 = vadd.xlane.f32.xlu0 %v171
      %v173 = vpop.xlane.xlu0 %172
      %v174 = vsel %vm105, %v164, 0.0
      %175 = vadd.xlane.f32.xlu0 %v174
      %v176 = vpop.xlane.xlu0 %175
      %v177 = vsel %vm105, %v165, 0.0
      %178 = vadd.xlane.f32.xlu0 %v177
      %v179 = vpop.xlane.xlu0 %178
      %v180 = vsel %vm105, %v166, 0.0
      %181 = vadd.xlane.f32.xlu0 %v180
      %v182 = vpop.xlane.xlu0 %181
      %v183 = vsel %vm105, %v167, 0.0
      %184 = vadd.xlane.f32.xlu0 %v183
      %v185 = vpop.xlane.xlu0 %184
      %v186 = vsel %vm105, %v168, 0.0
      %187 = vadd.xlane.f32.xlu0 %v186
      %v188 = vpop.xlane.xlu0 %187
      %v189 = vsel %vm105, %v169, 0.0
      %190 = vadd.xlane.f32.xlu0 %v189
      %v191 = vpop.xlane.xlu0 %190
      %v192 = vsel %vm105, %v170, 0.0
      %193 = vadd.xlane.f32.xlu0 %v192
      %v194 = vpop.xlane.xlu0 %193
      %v195 = vlaneseq
      %v196 = vand.u32 %v195, 127
      %v197 = vstv 0
      %v198 = vadd.s32 %v197, %v196
      %v199 = vstv %s110
      %vm200 = vcmp.lt.s32.totalorder %v198, %v199
      %v209 = vperm.slane %v173, %v196
      %v210 = vperm.slane %v176, %v196
      %v211 = vperm.slane %v179, %v196
      %v212 = vperm.slane %v182, %v196
      %v213 = vperm.slane %v185, %v196
      %v214 = vperm.slane %v188, %v196
      %v215 = vperm.slane %v191, %v196
      %v216 = vperm.slane %v194, %v196
      %vm217 = vcmask 1041409
      %v218 = vsel %vm217, %v210, %v209
      %vm219 = vcmask 1042434
      %v220 = vsel %vm219, %v211, %v218
      %vm221 = vcmask 1043459
      %v222 = vsel %vm221, %v212, %v220
      %vm223 = vcmask 1044484
      %v224 = vsel %vm223, %v213, %v222
      %vm225 = vcmask 1045509
      %v226 = vsel %vm225, %v214, %v224
      %vm227 = vcmask 1046534
      %v228 = vsel %vm227, %v215, %v226
      %vm229 = vcmask 1047559
      %v230 = vsel %vm229, %v216, %v228
      %v232 = vsel %vm200, %v230, -1000000.0
      %v233 = vld [vmem:[#allocation3] sm:$0xff]
      %vm234 = vcmask 64512
      %v235 = vsel %vm234, %v232, -inf
      %236 = vmax.xlane.f32.xlu0 %v235
      %v237 = vpop.xlane.xlu0 %236
      %v238 = vmax.f32 %v233, %v237
      %v239 = vsub.f32 %v233, %v238
      %v240 = vmul.f32 %v239, 1.442695
      %v241 = vpow.pop %v240
      %243 = vset.pattern.permute.xlu0 0
      %244 = vperm.xlu0 %243, %v238
      %v245 = vpop.permute.xlu0 %244
      %v247 = vsub.f32 %v232, %v245
      %v248 = vmul.f32 %v247, 1.442695
      %v249 = vpow.pop %v248
      %v250 = vld [vmem:[#allocation4] sm:$0xff]
      %v251 = vmul.f32 %v241, %v250
      %v252 = vsel %vm234, %v249, 0.0
      %253 = vadd.xlane.f32.xlu0 %v252
      %v254 = vpop.xlane.xlu0 %253
      %v255 = vadd.f32 %v251, %v254
      %256 = vst.msk [vmem:[#allocation4] sm:$0xff] %vm111, %v255
      %v257 = vld [vmem:[%s3] sm:$0xff]
      %v258 = vld [vmem:[#allocation5] sm:$0xff]
      %260 = vset.pattern.permute.xlu0 0
      %261 = vperm.xlu0 %260, %v241
      %v262 = vpop.permute.xlu0 %261
      %v264 = vmul.f32 %v262, %v258
      %v266 = vsel %vm234, %v249, 0
      %268 = vmatpush.msra.mxu0 0.0
      %269 = vmatpush.msra.mxu0 0.0
      %270 = vmatpush.msra.mxu0 0.0
      %271 = vmatpush.msra.mxu0 0.0
      %272 = vmatpush.msra.mxu0 0.0
      %273 = vmatpush.msra.mxu0 0.0
      %274 = vmatpush.msra.mxu0 0.0
      %275 = vmatpush.msra.mxu0 0.0
      %276 = vmatpush.msra.mxu0 0.0
      %277 = vmatpush.msra.mxu0 0.0
      %278 = vmatpush.msra.mxu0 0.0
      %279 = vmatpush.msra.mxu0 0.0
      %280 = vmatpush.msra.mxu0 0.0
      %281 = vmatpush.msra.mxu0 0.0
      %282 = vmatpush.msra.mxu0 0.0
      %283 = vmatpush.msra.mxu0 %v257
      %284 = vmatmul.f32.gmra.mxu0 %v266
      %v285 = vpop.f32.mrf.mxu0
      %v286 = vadd.f32 0.0, %v285
      %287 = vdwg.mxu0
      %v288 = vadd.f32 %v264, %v286
      %289 = vst [vmem:[#allocation5] sm:$0xff] %v288
      %290 = vst.msk [vmem:[#allocation3] sm:$0xff] %vm111, %v238
    $region29: #{tpu_custom_call.1} parent=1 // pred_fallthru
      _
    %v291 = vld [vmem:[#allocation4] sm:$0xff]
    %v292 = vrcp.pop %v291
    %v293 = vmul.f32 %v291, %v292
    %v294 = vsub.f32 1.0, %v293
    %v295 = vmul.f32 %v292, %v294
    %v296 = vadd.f32 %v292, %v295
    %vm297 = vweird.f32 %v291
    %vm298 = vweird.f32 %v292
    %vm299 = vmor %vm297, %vm298
    %v300 = vsel %vm299, %v292, %v296
    %v301 = vand.u32 2147483647, %v291
    %vm302 = vcmp.eq.f32.partialorder %v301, 8.507059e+37
    %v303 = vand.u32 %v291, 2147483648
    %v304 = vor.u32 1.1754944e-38, %v303
    %v305 = vsel %vm302, %v304, %v300
    %v306 = vld [vmem:[#allocation5] sm:$0xff]
    %308 = vset.pattern.permute.xlu0 0
    %309 = vperm.xlu0 %308, %v305
    %v310 = vpop.permute.xlu0 %309
    %v312 = vmul.f32 %v306, %v310
    %313 = vst [vmem:[#allocation8] sm:$0xff] %v312
    %s314 = sadd.s32 %s109, 1
    %s315 = sld [smem:[#allocation7 + %s314]]
    %316 = vst.msk [vmem:[#allocation3] sm:$0xff] %vm111, -1e+30
    %317 = vst.msk [vmem:[#allocation4] sm:$0xff] %vm111, 0.0
    %318 = vst [vmem:[#allocation5] sm:$0xff] 0.0
    %p319 = scmp.lt.s32.totalorder 0, %s315
    // Predicated region
    $region30: #{tpu_custom_call.1} parent=1 // pred_check
      %p320 = pneg %p319
    $region31: #{tpu_custom_call.1} parent=1 // pred_check_branch
      %322 = sbr.rel (%p320) target = $region33
    $region32: #{tpu_custom_call.1} parent=1 // pred_region
      %s323 = sadd.s32 0, 8
      %s324 = scalar_lea.vmem [#allocation2], %s323
      %v325 = vld [vmem:[%s324] sm:$0xff]
      %v327 = vrot.slane %v70, 1
      %v328 = vrot.slane %v70, 2
      %v329 = vrot.slane %v70, 3
      %v330 = vrot.slane %v70, 4
      %v331 = vrot.slane %v70, 5
      %v332 = vrot.slane %v70, 6
      %v333 = vrot.slane %v70, 7
      %v334 = vperm.slane %v70, 0
      %v335 = vperm.slane %v327, 0
      %v336 = vperm.slane %v328, 0
      %v337 = vperm.slane %v329, 0
      %v338 = vperm.slane %v330, 0
      %v339 = vperm.slane %v331, 0
      %v340 = vperm.slane %v332, 0
      %v341 = vperm.slane %v333, 0
      %v350 = vadd.f32 %v334, %v325
      %v351 = vadd.f32 %v335, %v325
      %v352 = vadd.f32 %v336, %v325
      %v353 = vadd.f32 %v337, %v325
      %v354 = vadd.f32 %v338, %v325
      %v355 = vadd.f32 %v339, %v325
      %v356 = vadd.f32 %v340, %v325
      %v357 = vadd.f32 %v341, %v325
      %v358 = vtanh.pop %v350
      %v359 = vtanh.pop %v351
      %v360 = vtanh.pop %v352
      %v361 = vtanh.pop %v353
      %v362 = vtanh.pop %v354
      %v363 = vtanh.pop %v355
      %v364 = vtanh.pop %v356
      %v365 = vtanh.pop %v357
      %v367 = vperm.slane %v108, 0
      %v369 = vmul.f32 %v358, %v367
      %v370 = vmul.f32 %v359, %v367
      %v371 = vmul.f32 %v360, %v367
      %v372 = vmul.f32 %v361, %v367
      %v373 = vmul.f32 %v362, %v367
      %v374 = vmul.f32 %v363, %v367
      %v375 = vmul.f32 %v364, %v367
      %v376 = vmul.f32 %v365, %v367
      %v377 = vsel %vm105, %v369, 0.0
      %378 = vadd.xlane.f32.xlu0 %v377
      %v379 = vpop.xlane.xlu0 %378
      %v380 = vsel %vm105, %v370, 0.0
      %381 = vadd.xlane.f32.xlu0 %v380
      %v382 = vpop.xlane.xlu0 %381
      %v383 = vsel %vm105, %v371, 0.0
      %384 = vadd.xlane.f32.xlu0 %v383
      %v385 = vpop.xlane.xlu0 %384
      %v386 = vsel %vm105, %v372, 0.0
      %387 = vadd.xlane.f32.xlu0 %v386
      %v388 = vpop.xlane.xlu0 %387
      %v389 = vsel %vm105, %v373, 0.0
      %390 = vadd.xlane.f32.xlu0 %v389
      %v391 = vpop.xlane.xlu0 %390
      %v392 = vsel %vm105, %v374, 0.0
      %393 = vadd.xlane.f32.xlu0 %v392
      %v394 = vpop.xlane.xlu0 %393
      %v395 = vsel %vm105, %v375, 0.0
      %396 = vadd.xlane.f32.xlu0 %v395
      %v397 = vpop.xlane.xlu0 %396
      %v398 = vsel %vm105, %v376, 0.0
      %399 = vadd.xlane.f32.xlu0 %v398
      %v400 = vpop.xlane.xlu0 %399
      %v401 = vlaneseq
      %v402 = vand.u32 %v401, 127
      %v403 = vstv 0
      %v404 = vadd.s32 %v403, %v402
      %v405 = vstv %s315
      %vm406 = vcmp.lt.s32.totalorder %v404, %v405
      %v415 = vperm.slane %v379, %v402
      %v416 = vperm.slane %v382, %v402
      %v417 = vperm.slane %v385, %v402
      %v418 = vperm.slane %v388, %v402
      %v419 = vperm.slane %v391, %v402
      %v420 = vperm.slane %v394, %v402
      %v421 = vperm.slane %v397, %v402
      %v422 = vperm.slane %v400, %v402
      %vm423 = vcmask 1041409
      %v424 = vsel %vm423, %v416, %v415
      %vm425 = vcmask 1042434
      %v426 = vsel %vm425, %v417, %v424
      %vm427 = vcmask 1043459
      %v428 = vsel %vm427, %v418, %v426
      %vm429 = vcmask 1044484
      %v430 = vsel %vm429, %v419, %v428
      %vm431 = vcmask 1045509
      %v432 = vsel %vm431, %v420, %v430
      %vm433 = vcmask 1046534
      %v434 = vsel %vm433, %v421, %v432
      %vm435 = vcmask 1047559
      %v436 = vsel %vm435, %v422, %v434
      %v438 = vsel %vm406, %v436, -1000000.0
      %v439 = vld [vmem:[#allocation3] sm:$0xff]
      %vm440 = vcmask 64512
      %v441 = vsel %vm440, %v438, -inf
      %442 = vmax.xlane.f32.xlu0 %v441
      %v443 = vpop.xlane.xlu0 %442
      %v444 = vmax.f32 %v439, %v443
      %v445 = vsub.f32 %v439, %v444
      %v446 = vmul.f32 %v445, 1.442695
      %v447 = vpow.pop %v446
      %449 = vset.pattern.permute.xlu0 0
      %450 = vperm.xlu0 %449, %v444
      %v451 = vpop.permute.xlu0 %450
      %v453 = vsub.f32 %v438, %v451
      %v454 = vmul.f32 %v453, 1.442695
      %v455 = vpow.pop %v454
      %v456 = vld [vmem:[#allocation4] sm:$0xff]
      %v457 = vmul.f32 %v447, %v456
      %v458 = vsel %vm440, %v455, 0.0
      %459 = vadd.xlane.f32.xlu0 %v458
      %v460 = vpop.xlane.xlu0 %459
      %v461 = vadd.f32 %v457, %v460
      %462 = vst.msk [vmem:[#allocation4] sm:$0xff] %vm111, %v461
      %s463 = scalar_lea.vmem %s3, %s323
      %v464 = vld [vmem:[%s463] sm:$0xff]
      %v465 = vld [vmem:[#allocation5] sm:$0xff]
      %467 = vset.pattern.permute.xlu0 0
      %468 = vperm.xlu0 %467, %v447
      %v469 = vpop.permute.xlu0 %468
      %v471 = vmul.f32 %v469, %v465
      %v473 = vsel %vm440, %v455, 0
      %475 = vmatpush.msra.mxu0 0.0
      %476 = vmatpush.msra.mxu0 0.0
      %477 = vmatpush.msra.mxu0 0.0
      %478 = vmatpush.msra.mxu0 0.0
      %479 = vmatpush.msra.mxu0 0.0
      %480 = vmatpush.msra.mxu0 0.0
      %481 = vmatpush.msra.mxu0 0.0
      %482 = vmatpush.msra.mxu0 0.0
      %483 = vmatpush.msra.mxu0 0.0
      %484 = vmatpush.msra.mxu0 0.0
      %485 = vmatpush.msra.mxu0 0.0
      %486 = vmatpush.msra.mxu0 0.0
      %487 = vmatpush.msra.mxu0 0.0
      %488 = vmatpush.msra.mxu0 0.0
      %489 = vmatpush.msra.mxu0 0.0
      %490 = vmatpush.msra.mxu0 %v464
      %491 = vmatmul.f32.gmra.mxu0 %v473
      %v492 = vpop.f32.mrf.mxu0
      %v493 = vadd.f32 0.0, %v492
      %494 = vdwg.mxu0
      %v495 = vadd.f32 %v471, %v493
      %496 = vst [vmem:[#allocation5] sm:$0xff] %v495
      %497 = vst.msk [vmem:[#allocation3] sm:$0xff] %vm111, %v444
    $region33: #{tpu_custom_call.1} parent=1 // pred_fallthru
      _
    %v498 = vld [vmem:[#allocation4] sm:$0xff]
    %v499 = vrcp.pop %v498
    %v500 = vmul.f32 %v498, %v499
    %v501 = vsub.f32 1.0, %v500
    %v502 = vmul.f32 %v499, %v501
    %v503 = vadd.f32 %v499, %v502
    %vm504 = vweird.f32 %v498
    %vm505 = vweird.f32 %v499
    %vm506 = vmor %vm504, %vm505
    %v507 = vsel %vm506, %v499, %v503
    %v508 = vand.u32 2147483647, %v498
    %vm509 = vcmp.eq.f32.partialorder %v508, 8.507059e+37
    %v510 = vand.u32 %v498, 2147483648
    %v511 = vor.u32 1.1754944e-38, %v510
    %v512 = vsel %vm509, %v511, %v507
    %v513 = vld [vmem:[#allocation5] sm:$0xff]
    %515 = vset.pattern.permute.xlu0 0
    %516 = vperm.xlu0 %515, %v512
    %v517 = vpop.permute.xlu0 %516
    %v519 = vmul.f32 %v513, %v517
    %s520 = scalar_lea.vmem [#allocation8], 8
    %521 = vst [vmem:[%s520] sm:$0xff] %v519
    // Predicated region
    $region34: #{tpu_custom_call.1} parent=1 // pred_check
      _
    $region35: #{tpu_custom_call.1} parent=1 // pred_check_branch
      %523 = sbr.rel (0) target = $region37
    $region36: #{tpu_custom_call.1} parent=1 // pred_region
      %525 = vsyncadd [#allocation9], 0
      %s526 = sshll.u32 [#allocation8], 4
      %s527 = int_to_ptr.vmem [resolvable:$true] %s526
      %s528 = sshll.u32 %s7, 4
      %s529 = int_to_ptr.hbm [resolvable:$true] %s528
      %534 = dma.vmem_to_hbm [thread:$0]  %s527, 256, %s529, [#allocation9], 128, 128, 8
    $region37: #{tpu_custom_call.1} parent=1 // pred_fallthru
      _
    // Predicated region
    $region38: #{tpu_custom_call.1} parent=1 // pred_check
      _
    $region39: #{tpu_custom_call.1} parent=1 // pred_check_branch
      %536 = sbr.rel (0) target = $region41
    $region40: #{tpu_custom_call.1} parent=1 // pred_region
      %538 = dma.done [#allocation9], 256
    $region41: #{tpu_custom_call.1} parent=1 // pred_fallthru
      _
    %539 = vsyncpa [#allocation9], 1

</llo_original>
